<compile_context>
chip_gen: v6e
topology: v6e:2x2x1
jax: 0.10.0
libtpu: 0.0.40
codegen_flags: <defaults>
</compile_context>

<pallas_src>
import jax
import jax.numpy as jnp
from jax.experimental import pallas as pl
from jax.experimental.pallas import tpu as pltpu


_LANE = 128
_MAX_TILE_LANES = 8192                      # ~0.5-8K lanes already at HBM roofline
_VMEM_STEP_BUDGET = 16 * 1024 * 1024        # per-grid-step working set budget
_VMEM_LIMIT_BYTES = 32 * 1024 * 1024        # safe on v5e/v6e (128 MiB) and v7x (64 MiB)


def _softmax_c_kernel(xr_ref, xi_ref, or_ref, oi_ref):
    """Block shape (1, C, T): numerically-stable softmax over axis=1 (channels)
    applied independently to the real and imaginary planes."""

    def _softmax(x):
        m = jnp.max(x, axis=1, keepdims=True)       # (1, 1, T)
        e = jnp.exp(x - m)                          # (1, C, T)
        return e / jnp.sum(e, axis=1, keepdims=True)

    or_ref[...] = _softmax(xr_ref[...])
    oi_ref[...] = _softmax(xi_ref[...])


def _pick_tile(C: int, S: int) -> int:
    """Pick a lane-dense tile of the flattened spatial axis.

    Budget counts 2 inputs + 2 outputs, double-buffered, plus ~1 tile of
    in-kernel temporaries per plane  ->  ~48 * C * T bytes per grid step.
    Prefers a T that divides S exactly so every tile stores unmasked.
    """
    cap = _VMEM_STEP_BUDGET // (48 * C)
    cap = max(_LANE, min(_MAX_TILE_LANES, (cap // _LANE) * _LANE))
    if S % _LANE != 0 or S <= cap:
        # Full extent is always layout-legal and avoids a masked partial tile.
        return S
    # Largest multiple of 128 that divides S and fits the cap.
    for t in range(cap, _LANE - 1, -_LANE):
        if S % t == 0:
            return t
    return cap  # unreachable when S % 128 == 0 (t = 128 always divides S)


def complex_softmax(x: jax.Array) -> jax.Array:
    """x: complex (B, C, H, W). Returns softmax(real, 1) + 1j * softmax(imag, 1)."""
    # nn.Softmax() with implicit dim only resolves to dim=1 for 4-D input.
    assert x.ndim == 4, "expected NCHW input"
    B, C, H, W = x.shape
    S = H * W

    # Two lane-dense f32 planes; the (H, W) -> S flatten is a free reshape.
    xr = jnp.real(x).astype(jnp.float32).reshape(B, C, S)
    xi = jnp.imag(x).astype(jnp.float32).reshape(B, C, S)

    T = _pick_tile(C, S)
    # Make sure both v7x TensorCores get work even for B == 1, if T splits cleanly.
    if B * pl.cdiv(S, T) < 2 and T % (2 * _LANE) == 0:
        T //= 2
    num_tiles = pl.cdiv(S, T)

    spec = pl.BlockSpec((1, C, T), lambda b, t: (b, 0, t))

    out_r, out_i = pl.pallas_call(
        _softmax_c_kernel,
        out_shape=(
            jax.ShapeDtypeStruct((B, C, S), jnp.float32),
            jax.ShapeDtypeStruct((B, C, S), jnp.float32),
        ),
        grid_spec=pl.GridSpec(
            grid=(B, num_tiles),
            in_specs=[spec, spec],
            out_specs=[spec, spec],
        ),
        compiler_params=pltpu.CompilerParams(
            dimension_semantics=("parallel", "parallel"),
            vmem_limit_bytes=_VMEM_LIMIT_BYTES,
        ),
    )(xr, xi)

    return jax.lax.complex(out_r, out_i).reshape(B, C, H, W)


def _reference(x):
    sr = jax.nn.softmax(jnp.real(x).astype(jnp.float32), axis=1)
    si = jax.nn.softmax(jnp.imag(x).astype(jnp.float32), axis=1)
    return jax.lax.complex(sr, si)


if __name__ == "__main__":
    key = jax.random.PRNGKey(0)
    kr, ki = jax.random.split(key)
    B, C, H, W = 2, 4, 16, 16
    x = jax.lax.complex(
        jax.random.normal(kr, (B, C, H, W), dtype=jnp.float32),
        jax.random.normal(ki, (B, C, H, W), dtype=jnp.float32),
    )

    out = jax.block_until_ready(complex_softmax(x))
    ref = _reference(x)

    assert out.shape == (B, C, H, W)
    assert out.dtype == jnp.complex64
    assert jnp.allclose(out.real, ref.real, atol=1e-4, rtol=1e-4)
    assert jnp.allclose(out.imag, ref.imag, atol=1e-4, rtol=1e-4)

    print("KERNEL_OK")
</pallas_src>

<mosaic_0001>
module attributes {stable_mosaic.version = 11 : i64} {
  func.func @_softmax_c_kernel(%arg0: i32, %arg1: i32, %arg2: memref<1x4x256xf32, #tpu.memory_space<vmem>>, %arg3: memref<1x4x256xf32, #tpu.memory_space<vmem>>, %arg4: memref<1x4x256xf32, #tpu.memory_space<vmem>>, %arg5: memref<1x4x256xf32, #tpu.memory_space<vmem>>) attributes {dimension_semantics = [#tpu.dimension_semantics<parallel>, #tpu.dimension_semantics<parallel>], iteration_bounds = array<i64: 2, 1>, scalar_prefetch = 0 : i64, scratch_operands = 0 : i64, tpu.core_type = #tpu.core_type<tc>, window_params = [{transform_indices = @transform_0, window_bounds = array<i64: 1, 4, 256>}, {transform_indices = @transform_1, window_bounds = array<i64: 1, 4, 256>}, {transform_indices = @transform_2, window_bounds = array<i64: 1, 4, 256>}, {transform_indices = @transform_3, window_bounds = array<i64: 1, 4, 256>}]} {
    %c0 = arith.constant 0 : index
    %c0_0 = arith.constant 0 : index
    %c0_1 = arith.constant 0 : index
    %0 = vector.load %arg2[%c0, %c0_0, %c0_1] : memref<1x4x256xf32, #tpu.memory_space<vmem>>, vector<1x4x256xf32>
    %cst = arith.constant dense<0xFF800000> : vector<1x256xf32>
    %1 = vector.multi_reduction <maximumf>, %0, %cst [1] : vector<1x4x256xf32> to vector<1x256xf32>
    %2 = vector.shape_cast %1 : vector<1x256xf32> to vector<1x1x256xf32>
    %3 = vector.broadcast %2 : vector<1x1x256xf32> to vector<1x4x256xf32>
    %4 = arith.subf %0, %3 : vector<1x4x256xf32>
    %5 = math.exp %4 : vector<1x4x256xf32>
    %cst_2 = arith.constant dense<0.000000e+00> : vector<1x256xf32>
    %6 = vector.multi_reduction <add>, %5, %cst_2 [1] : vector<1x4x256xf32> to vector<1x256xf32>
    %7 = vector.shape_cast %6 : vector<1x256xf32> to vector<1x1x256xf32>
    %8 = vector.broadcast %7 : vector<1x1x256xf32> to vector<1x4x256xf32>
    %9 = arith.divf %5, %8 : vector<1x4x256xf32>
    %c0_3 = arith.constant 0 : index
    %c0_4 = arith.constant 0 : index
    %c0_5 = arith.constant 0 : index
    %10 = vector.load %arg4[%c0_3, %c0_4, %c0_5] : memref<1x4x256xf32, #tpu.memory_space<vmem>>, vector<1x4x256xf32>
    tpu.vector_store %arg4[%c0_3, %c0_4, %c0_5], %9 {strides = array<i32>} : memref<1x4x256xf32, #tpu.memory_space<vmem>>, vector<1x4x256xf32>,
    %c0_6 = arith.constant 0 : index
    %c0_7 = arith.constant 0 : index
    %c0_8 = arith.constant 0 : index
    %11 = vector.load %arg3[%c0_6, %c0_7, %c0_8] : memref<1x4x256xf32, #tpu.memory_space<vmem>>, vector<1x4x256xf32>
    %cst_9 = arith.constant dense<0xFF800000> : vector<1x256xf32>
    %12 = vector.multi_reduction <maximumf>, %11, %cst_9 [1] : vector<1x4x256xf32> to vector<1x256xf32>
    %13 = vector.shape_cast %12 : vector<1x256xf32> to vector<1x1x256xf32>
    %14 = vector.broadcast %13 : vector<1x1x256xf32> to vector<1x4x256xf32>
    %15 = arith.subf %11, %14 : vector<1x4x256xf32>
    %16 = math.exp %15 : vector<1x4x256xf32>
    %cst_10 = arith.constant dense<0.000000e+00> : vector<1x256xf32>
    %17 = vector.multi_reduction <add>, %16, %cst_10 [1] : vector<1x4x256xf32> to vector<1x256xf32>
    %18 = vector.shape_cast %17 : vector<1x256xf32> to vector<1x1x256xf32>
    %19 = vector.broadcast %18 : vector<1x1x256xf32> to vector<1x4x256xf32>
    %20 = arith.divf %16, %19 : vector<1x4x256xf32>
    %c0_11 = arith.constant 0 : index
    %c0_12 = arith.constant 0 : index
    %c0_13 = arith.constant 0 : index
    %21 = vector.load %arg5[%c0_11, %c0_12, %c0_13] : memref<1x4x256xf32, #tpu.memory_space<vmem>>, vector<1x4x256xf32>
    tpu.vector_store %arg5[%c0_11, %c0_12, %c0_13], %20 {strides = array<i32>} : memref<1x4x256xf32, #tpu.memory_space<vmem>>, vector<1x4x256xf32>,
    return
  }
  func.func @transform_0(%arg0: i32, %arg1: i32) -> (i32, i32, i32) {
    %c0_i32 = arith.constant 0 : i32
    %c0_i32_0 = arith.constant 0 : i32
    return %arg0, %c0_i32, %arg1 : i32, i32, i32
  }
  func.func @transform_1(%arg0: i32, %arg1: i32) -> (i32, i32, i32) {
    %c0_i32 = arith.constant 0 : i32
    %c0_i32_0 = arith.constant 0 : i32
    return %arg0, %c0_i32, %arg1 : i32, i32, i32
  }
  func.func @transform_2(%arg0: i32, %arg1: i32) -> (i32, i32, i32) {
    %c0_i32 = arith.constant 0 : i32
    %c0_i32_0 = arith.constant 0 : i32
    return %arg0, %c0_i32, %arg1 : i32, i32, i32
  }
  func.func @transform_3(%arg0: i32, %arg1: i32) -> (i32, i32, i32) {
    %c0_i32 = arith.constant 0 : i32
    %c0_i32_0 = arith.constant 0 : i32
    return %arg0, %c0_i32, %arg1 : i32, i32, i32
  }
}

</mosaic_0001>

<llo_original>
// kernel: tpu_custom_call.1
$region0: #{tpu_custom_call.1}
  #allocation0 [shape = 'u32[]', space=smem, size = 0x4, offset = 0x4, fixed_abs, tag = 'smem constant byte address 0x4 - core index']
  #allocation1 [shape = 'u32[144,128]{1,0:T(1,128)}', space=vmem, size = 0x12000, scoped, tag = 'internal scratch']
  %s0 = inlined_call_operand.hbm [shape: f32[2,4,256], index: 0, kind: input, shape index: {}]
  %s1 = inlined_call_operand.hbm [shape: f32[2,4,256], index: 1, kind: input, shape index: {}]
  %s2 = inlined_call_operand.hbm [shape: f32[2,4,256], index: 2, kind: output, shape index: {0}]
  %s3 = inlined_call_operand.hbm [shape: f32[2,4,256], index: 3, kind: output, shape index: {1}]
  %4 = xla_tuple %s2, %s3
  %s5 = sld [smem:[#allocation0]]
  $region57: #{tpu_custom_call.1} parent=0
    _
  %s7 = ssub.s32 1, %s5
  %s8 = scalar_select 0, %s7, %s5
  $region1: #{tpu_custom_call.1} parent=0
    #allocation2 [shape = 'u8[8192]{0}', space=vmem, size = 0x2000, scoped, tag = 'input window, operand 0']
    #allocation3 [shape = 's32[2]{0}', space=sflag, size = 0x8, scoped, tag = 'scoped memory for tpu_custom_call.1']
    #allocation4 [shape = 's32[2]{0}', space=sflag, size = 0x8, scoped, tag = 'scoped memory for tpu_custom_call.1']
    #allocation5 [shape = 'u8[8192]{0}', space=vmem, size = 0x2000, scoped, tag = 'input window, operand 1']
    #allocation6 [shape = 's32[2]{0}', space=sflag, size = 0x8, scoped, tag = 'scoped memory for tpu_custom_call.1']
    #allocation7 [shape = 'u8[8192]{0}', space=vmem, size = 0x2000, scoped, tag = 'output window, operand 0']
    #allocation8 [shape = 'u8[8192]{0}', space=vmem, size = 0x2000, scoped, tag = 'output window, operand 1']
    #allocation9 [shape = 's32[2]{0}', space=sflag, size = 0x8, scoped, tag = 'scoped memory for tpu_custom_call.1']
    %9 = vsyncpa [#allocation3], 0
    %s10 = scalar_lea.sflag [#allocation3], 1
    %11 = vsyncpa %s10, 0
    %12 = vsyncpa [#allocation6], 0
    %s13 = scalar_lea.sflag [#allocation6], 1
    %14 = vsyncpa %s13, 0
    %15 = vsyncpa [#allocation4], 0
    %s16 = scalar_lea.sflag [#allocation4], 1
    %17 = vsyncpa %s16, 0
    %18 = vsyncpa [#allocation9], 0
    %s19 = scalar_lea.sflag [#allocation9], 1
    %20 = vsyncpa %s19, 0
    loop: start=0, step=1, limit=4
    $region2: #{tpu_custom_call.1} parent=1 // loop_pre_header
      _
    $region3: #{tpu_custom_call.1} parent=1 // loop_header
      %s22 = sphi 0, %s26
      %p23 = scmp.ge.s32.totalorder %s22, 4
      %s29 = sphi 0, %s41
      %s30 = sphi 0, %s37
      %s31 = sphi 0, %s29
      %s32 = sphi 0, %s30
      %s33 = sphi 0, %s31
      %s34 = sphi 0, %s32
      %s46 = sphi 0, %s48
      %s49 = sphi 0, %s46
      %s50 = sphi 0, %s49
      %s66 = sphi 0, %s50
      %s74 = sphi 0, %s76
      %s77 = sphi 0, %s74
      %s78 = sphi 0, %s77
      %s94 = sphi 0, %s78
      %s102 = sphi 0, %s104
      %s105 = sphi 0, %s102
      %s106 = sphi 0, %s105
      %s122 = sphi 0, %s106
      %s130 = sphi 0, %s132
      %s133 = sphi 0, %s130
      %s134 = sphi 0, %s133
      %s150 = sphi 0, %s134
    $region4: #{tpu_custom_call.1} parent=1 // loop_header_branch
      %25 = sbr.rel (%p23) target = $region8
    $region5: #{tpu_custom_call.1} parent=1 // loop_body
      %s27 = ssub.s32 %s22, 1
      %s28 = ssub.s32 %s22, 2
      %s35 = sadd.s32 1, %s30
      %p36 = scmp.ge.s32.totalorder %s35, 1
      %s37 = scalar_select %p36, 0, %s35
      %s38 = sadd.s32 1, %s29
      %s39 = scalar_select %p36, %s38, %s29
      %p40 = scmp.ge.s32.totalorder %s39, 2
      %s41 = scalar_select %p40, 0, %s39
      %s42 = ssub.s32 %s29, %s41
      %s43 = ssub.s32 %s30, %s37
      %s44 = sor.u32 %s42, %s43
      %p45 = scmp.eq.s32.totalorder %s44, 0
      %s47 = sadd.s32 %s46, 1
      %s48 = scalar_select %p45, %s46, %s47
      %p51 = pneg %p45
      %p52 = scmp.eq.s32.totalorder %s22, 1
      %p53 = por %p51, %p52
      %p54 = scmp.ne.s32.totalorder %s46, %s49
      %p55 = scmp.eq.s32.totalorder %s22, 0
      %p56 = por %p54, %p55
      %p57 = scmp.ne.s32.totalorder %s46, %s49
      %p58 = scmp.eq.s32.totalorder %s27, 1
      %p59 = por %p57, %p58
      %p60 = scmp.ne.s32.totalorder %s49, %s50
      %p61 = scmp.eq.s32.totalorder %s27, 0
      %p62 = por %p60, %p61
      %p63 = scmp.ne.s32.totalorder %s49, %s50
      %p64 = scmp.eq.s32.totalorder %s28, 1
      %p65 = por %p63, %p64
      %p67 = scmp.ne.s32.totalorder %s50, %s66
      %p68 = scmp.eq.s32.totalorder %s28, 0
      %p69 = por %p67, %p68
      %s70 = ssub.s32 %s29, %s41
      %s71 = ssub.s32 %s30, %s37
      %s72 = sor.u32 %s70, %s71
      %p73 = scmp.eq.s32.totalorder %s72, 0
      %s75 = sadd.s32 %s74, 1
      %s76 = scalar_select %p73, %s74, %s75
      %p79 = pneg %p73
      %p80 = scmp.eq.s32.totalorder %s22, 1
      %p81 = por %p79, %p80
      %p82 = scmp.ne.s32.totalorder %s74, %s77
      %p83 = scmp.eq.s32.totalorder %s22, 0
      %p84 = por %p82, %p83
      %p85 = scmp.ne.s32.totalorder %s74, %s77
      %p86 = scmp.eq.s32.totalorder %s27, 1
      %p87 = por %p85, %p86
      %p88 = scmp.ne.s32.totalorder %s77, %s78
      %p89 = scmp.eq.s32.totalorder %s27, 0
      %p90 = por %p88, %p89
      %p91 = scmp.ne.s32.totalorder %s77, %s78
      %p92 = scmp.eq.s32.totalorder %s28, 1
      %p93 = por %p91, %p92
      %p95 = scmp.ne.s32.totalorder %s78, %s94
      %p96 = scmp.eq.s32.totalorder %s28, 0
      %p97 = por %p95, %p96
      %s98 = ssub.s32 %s29, %s41
      %s99 = ssub.s32 %s30, %s37
      %s100 = sor.u32 %s98, %s99
      %p101 = scmp.eq.s32.totalorder %s100, 0
      %s103 = sadd.s32 %s102, 1
      %s104 = scalar_select %p101, %s102, %s103
      %p107 = pneg %p101
      %p108 = scmp.eq.s32.totalorder %s22, 1
      %p109 = por %p107, %p108
      %p110 = scmp.ne.s32.totalorder %s102, %s105
      %p111 = scmp.eq.s32.totalorder %s22, 0
      %p112 = por %p110, %p111
      %p113 = scmp.ne.s32.totalorder %s102, %s105
      %p114 = scmp.eq.s32.totalorder %s27, 1
      %p115 = por %p113, %p114
      %p116 = scmp.ne.s32.totalorder %s105, %s106
      %p117 = scmp.eq.s32.totalorder %s27, 0
      %p118 = por %p116, %p117
      %p119 = scmp.ne.s32.totalorder %s105, %s106
      %p120 = scmp.eq.s32.totalorder %s28, 1
      %p121 = por %p119, %p120
      %p123 = scmp.ne.s32.totalorder %s106, %s122
      %p124 = scmp.eq.s32.totalorder %s28, 0
      %p125 = por %p123, %p124
      %s126 = ssub.s32 %s29, %s41
      %s127 = ssub.s32 %s30, %s37
      %s128 = sor.u32 %s126, %s127
      %p129 = scmp.eq.s32.totalorder %s128, 0
      %s131 = sadd.s32 %s130, 1
      %s132 = scalar_select %p129, %s130, %s131
      %p135 = pneg %p129
      %p136 = scmp.eq.s32.totalorder %s22, 1
      %p137 = por %p135, %p136
      %p138 = scmp.ne.s32.totalorder %s130, %s133
      %p139 = scmp.eq.s32.totalorder %s22, 0
      %p140 = por %p138, %p139
      %p141 = scmp.ne.s32.totalorder %s130, %s133
      %p142 = scmp.eq.s32.totalorder %s27, 1
      %p143 = por %p141, %p142
      %p144 = scmp.ne.s32.totalorder %s133, %s134
      %p145 = scmp.eq.s32.totalorder %s27, 0
      %p146 = por %p144, %p145
      %p147 = scmp.ne.s32.totalorder %s133, %s134
      %p148 = scmp.eq.s32.totalorder %s28, 1
      %p149 = por %p147, %p148
      %p151 = scmp.ne.s32.totalorder %s134, %s150
      %p152 = scmp.eq.s32.totalorder %s28, 0
      %p153 = por %p151, %p152
      %p154 = scmp.le.s32.totalorder 1, %s22
      %p155 = scmp.lt.s32.totalorder %s22, 3
      %p156 = pnand %p154, %p155
      %p157 = pneg %p156
      // Predicated region
      $region9: #{tpu_custom_call.1} parent=5 // pred_check
        _
      $region10: #{tpu_custom_call.1} parent=5 // pred_check_branch
        %159 = sbr.rel (%p156) target = $region12
      $region11: #{tpu_custom_call.1} parent=5 // pred_region
        %s160 = ssub.s32 %s22, 1
      $region12: #{tpu_custom_call.1} parent=5 // pred_fallthru
        _
      %p161 = scmp.lt.s32.totalorder %s22, 2
      // Predicated region
      $region13: #{tpu_custom_call.1} parent=5 // pred_check
        %p162 = pneg %p161
      $region14: #{tpu_custom_call.1} parent=5 // pred_check_branch
        %164 = sbr.rel (%p162) target = $region16
      $region15: #{tpu_custom_call.1} parent=5 // pred_region
        // Predicated region
        $region17: #{tpu_custom_call.1} parent=15 // pred_check
          %p165 = pneg %p56
        $region18: #{tpu_custom_call.1} parent=15 // pred_check_branch
          %167 = sbr.rel (%p165) target = $region20
        $region19: #{tpu_custom_call.1} parent=15 // pred_region
          %s168 = sand.u32 %s46, 1
          %s169 = scalar_lea.sflag [#allocation3], %s168
          %s170 = sand.u32 %s46, 1
          %s171 = smul.addr %s170, 8
          %s172 = scalar_lea.vmem [#allocation2], %s171
          %s173 = smul.u32 2, %s30
          %s175 = ssub.s32 128, 128
          %176 = vsyncadd %s169, %s175
          %s177 = smul.addr %s29, 2
          %s178 = sadd.s32 %s173, %s177
          %s179 = smul.addr %s178, 64
          %s180 = scalar_lea.hbm %s0, %s179
          %s182 = sshll.u32 %s172, 4
          %s183 = int_to_ptr.vmem [resolvable:$true] %s182
          %185 = dma.hbm_to_vmem [thread:$0]  %s180, 128, %s183, %s169
        $region20: #{tpu_custom_call.1} parent=15 // pred_fallthru
          _
        // Predicated region
        $region21: #{tpu_custom_call.1} parent=15 // pred_check
          %p186 = pneg %p84
        $region22: #{tpu_custom_call.1} parent=15 // pred_check_branch
          %188 = sbr.rel (%p186) target = $region24
        $region23: #{tpu_custom_call.1} parent=15 // pred_region
          %s189 = sand.u32 %s74, 1
          %s190 = scalar_lea.sflag [#allocation6], %s189
          %s191 = sand.u32 %s74, 1
          %s192 = smul.addr %s191, 8
          %s193 = scalar_lea.vmem [#allocation5], %s192
          %s194 = smul.u32 2, %s30
          %s196 = ssub.s32 128, 128
          %197 = vsyncadd %s190, %s196
          %s198 = smul.addr %s29, 2
          %s199 = sadd.s32 %s194, %s198
          %s200 = smul.addr %s199, 64
          %s201 = scalar_lea.hbm %s1, %s200
          %s203 = sshll.u32 %s193, 4
          %s204 = int_to_ptr.vmem [resolvable:$true] %s203
          %206 = dma.hbm_to_vmem [thread:$0]  %s201, 128, %s204, %s190
        $region24: #{tpu_custom_call.1} parent=15 // pred_fallthru
          _
      $region16: #{tpu_custom_call.1} parent=5 // pred_fallthru
        _
      %p207 = scmp.le.s32.totalorder 1, %s22
      %p208 = scmp.lt.s32.totalorder %s22, 3
      %p209 = pnand %p207, %p208
      %p210 = pneg %p209
      // Predicated region
      $region25: #{tpu_custom_call.1} parent=5 // pred_check
        _
      $region26: #{tpu_custom_call.1} parent=5 // pred_check_branch
        %212 = sbr.rel (%p209) target = $region28
      $region27: #{tpu_custom_call.1} parent=5 // pred_region
        %s213 = ssub.s32 %s22, 1
        %s214 = sand.u32 %s49, 1
        %s215 = scalar_lea.sflag [#allocation3], %s214
        %s216 = sand.u32 %s49, 1
        %s217 = smul.addr %s216, 8
        %s218 = scalar_lea.vmem [#allocation2], %s217
        // Predicated region
        $region29: #{tpu_custom_call.1} parent=27 // pred_check
          %p219 = pneg %p62
        $region30: #{tpu_custom_call.1} parent=27 // pred_check_branch
          %221 = sbr.rel (%p219) target = $region32
        $region31: #{tpu_custom_call.1} parent=27 // pred_region
          %222 = dma.done %s215, 128
        $region32: #{tpu_custom_call.1} parent=27 // pred_fallthru
          _
        %s223 = sand.u32 %s77, 1
        %s224 = scalar_lea.sflag [#allocation6], %s223
        %s225 = sand.u32 %s77, 1
        %s226 = smul.addr %s225, 8
        %s227 = scalar_lea.vmem [#allocation5], %s226
        // Predicated region
        $region33: #{tpu_custom_call.1} parent=27 // pred_check
          %p228 = pneg %p90
        $region34: #{tpu_custom_call.1} parent=27 // pred_check_branch
          %230 = sbr.rel (%p228) target = $region36
        $region35: #{tpu_custom_call.1} parent=27 // pred_region
          %231 = dma.done %s224, 128
        $region36: #{tpu_custom_call.1} parent=27 // pred_fallthru
          _
        %s232 = sand.u32 %s49, 1
        %s233 = scalar_lea.sflag [#allocation3], %s232
        %s234 = sand.u32 %s49, 1
        %s235 = smul.addr %s234, 8
        %s236 = scalar_lea.vmem [#allocation2], %s235
        %p237 = pneg %p62
        %p238 = pneg %p59
        %s239 = sand.u32 %s77, 1
        %s240 = scalar_lea.sflag [#allocation6], %s239
        %s241 = sand.u32 %s77, 1
        %s242 = smul.addr %s241, 8
        %s243 = scalar_lea.vmem [#allocation5], %s242
        %p244 = pneg %p90
        %p245 = pneg %p87
        %p246 = pneg %p118
        %p247 = pneg %p115
        %s248 = sand.u32 %s105, 1
        %s249 = scalar_lea.sflag [#allocation4], %s248
        %s250 = sand.u32 %s105, 1
        %s251 = smul.addr %s250, 8
        %s252 = scalar_lea.vmem [#allocation7], %s251
        %p253 = pneg %p146
        %p254 = pneg %p143
        %s255 = sand.u32 %s133, 1
        %s256 = scalar_lea.sflag [#allocation9], %s255
        %s257 = sand.u32 %s133, 1
        %s258 = smul.addr %s257, 8
        %s259 = scalar_lea.vmem [#allocation8], %s258
        %s260 = smul.u32 2, %s32
        %s261 = smul.u32 2, %s32
        %s262 = smul.u32 2, %s32
        %s263 = smul.u32 2, %s32
        %v264 = vld [vmem:[%s218] sm:$0xff]
        %v266 = vcombine.high %v264, %v264
        %vm268 = vcmask 1043456
        %v269 = vsel %vm268, %v264, -inf
        %v270 = vrot.slane %v269, 4
        %v271 = vmax.f32 %v269, %v270
        %v272 = vrot.slane %v271, 2
        %v273 = vmax.f32 %v271, %v272
        %v274 = vrot.slane %v273, 1
        %v275 = vmax.f32 %v273, %v274
        %v276 = vsel %vm268, %v266, -inf
        %v277 = vrot.slane %v276, 4
        %v278 = vmax.f32 %v276, %v277
        %v279 = vrot.slane %v278, 2
        %v280 = vmax.f32 %v278, %v279
        %v281 = vrot.slane %v280, 1
        %v282 = vmax.f32 %v280, %v281
        %v285 = vcombine.low %v275, %v282
        %v287 = vsub.f32 %v264, %v285
        %v288 = vmul.f32 %v287, 1.442695
        %v289 = vpow.pop %v288
        %v291 = vcombine.high %v289, %v289
        %v293 = vsel %vm268, %v289, 0.0
        %v294 = vrot.slane %v293, 4
        %v295 = vadd.f32 %v293, %v294
        %v296 = vrot.slane %v295, 2
        %v297 = vadd.f32 %v295, %v296
        %v298 = vrot.slane %v297, 1
        %v299 = vadd.f32 %v297, %v298
        %v300 = vsel %vm268, %v291, 0.0
        %v301 = vrot.slane %v300, 4
        %v302 = vadd.f32 %v300, %v301
        %v303 = vrot.slane %v302, 2
        %v304 = vadd.f32 %v302, %v303
        %v305 = vrot.slane %v304, 1
        %v306 = vadd.f32 %v304, %v305
        %v309 = vcombine.low %v299, %v306
        %v311 = vrcp.pop %v309
        %v312 = vmul.f32 %v289, %v311
        %313 = vst [vmem:[%s252] sm:$0xff] %v312
        %v314 = vld [vmem:[%s227] sm:$0xff]
        %v316 = vcombine.high %v314, %v314
        %v318 = vsel %vm268, %v314, -inf
        %v319 = vrot.slane %v318, 4
        %v320 = vmax.f32 %v318, %v319
        %v321 = vrot.slane %v320, 2
        %v322 = vmax.f32 %v320, %v321
        %v323 = vrot.slane %v322, 1
        %v324 = vmax.f32 %v322, %v323
        %v325 = vsel %vm268, %v316, -inf
        %v326 = vrot.slane %v325, 4
        %v327 = vmax.f32 %v325, %v326
        %v328 = vrot.slane %v327, 2
        %v329 = vmax.f32 %v327, %v328
        %v330 = vrot.slane %v329, 1
        %v331 = vmax.f32 %v329, %v330
        %v334 = vcombine.low %v324, %v331
        %v336 = vsub.f32 %v314, %v334
        %v337 = vmul.f32 %v336, 1.442695
        %v338 = vpow.pop %v337
        %v340 = vcombine.high %v338, %v338
        %v342 = vsel %vm268, %v338, 0.0
        %v343 = vrot.slane %v342, 4
        %v344 = vadd.f32 %v342, %v343
        %v345 = vrot.slane %v344, 2
        %v346 = vadd.f32 %v344, %v345
        %v347 = vrot.slane %v346, 1
        %v348 = vadd.f32 %v346, %v347
        %v349 = vsel %vm268, %v340, 0.0
        %v350 = vrot.slane %v349, 4
        %v351 = vadd.f32 %v349, %v350
        %v352 = vrot.slane %v351, 2
        %v353 = vadd.f32 %v351, %v352
        %v354 = vrot.slane %v353, 1
        %v355 = vadd.f32 %v353, %v354
        %v358 = vcombine.low %v348, %v355
        %v360 = vrcp.pop %v358
        %v361 = vmul.f32 %v338, %v360
        %362 = vst [vmem:[%s259] sm:$0xff] %v361
        %s363 = sand.u32 %s105, 1
        %s364 = scalar_lea.sflag [#allocation4], %s363
        %s365 = sand.u32 %s105, 1
        %s366 = smul.addr %s365, 8
        %s367 = scalar_lea.vmem [#allocation7], %s366
        %s368 = sand.u32 %s133, 1
        %s369 = scalar_lea.sflag [#allocation9], %s368
        %s370 = sand.u32 %s133, 1
        %s371 = smul.addr %s370, 8
        %s372 = scalar_lea.vmem [#allocation8], %s371
        // Predicated region
        $region37: #{tpu_custom_call.1} parent=27 // pred_check
          %p373 = pneg %p115
        $region38: #{tpu_custom_call.1} parent=27 // pred_check_branch
          %375 = sbr.rel (%p373) target = $region40
        $region39: #{tpu_custom_call.1} parent=27 // pred_region
          %s376 = smul.u32 2, %s32
          %s378 = ssub.s32 128, 128
          %379 = vsyncadd %s364, %s378
          %s380 = smul.addr %s31, 2
          %s381 = sadd.s32 %s376, %s380
          %s382 = smul.addr %s381, 64
          %s383 = scalar_lea.hbm %s2, %s382
          %s385 = sshll.u32 %s367, 4
          %s386 = int_to_ptr.vmem [resolvable:$true] %s385
          %388 = dma.vmem_to_hbm [thread:$0]  %s386, 128, %s383, %s364
        $region40: #{tpu_custom_call.1} parent=27 // pred_fallthru
          _
        // Predicated region
        $region41: #{tpu_custom_call.1} parent=27 // pred_check
          %p389 = pneg %p143
        $region42: #{tpu_custom_call.1} parent=27 // pred_check_branch
          %391 = sbr.rel (%p389) target = $region44
        $region43: #{tpu_custom_call.1} parent=27 // pred_region
          %s392 = smul.u32 2, %s32
          %s394 = ssub.s32 128, 128
          %395 = vsyncadd %s369, %s394
          %s396 = smul.addr %s31, 2
          %s397 = sadd.s32 %s392, %s396
          %s398 = smul.addr %s397, 64
          %s399 = scalar_lea.hbm %s3, %s398
          %s401 = sshll.u32 %s372, 4
          %s402 = int_to_ptr.vmem [resolvable:$true] %s401
          %404 = dma.vmem_to_hbm [thread:$0]  %s402, 128, %s399, %s369
        $region44: #{tpu_custom_call.1} parent=27 // pred_fallthru
          _
      $region28: #{tpu_custom_call.1} parent=5 // pred_fallthru
        _
      %p405 = scmp.le.s32.totalorder 2, %s22
      // Predicated region
      $region45: #{tpu_custom_call.1} parent=5 // pred_check
        %p406 = pneg %p405
      $region46: #{tpu_custom_call.1} parent=5 // pred_check_branch
        %408 = sbr.rel (%p406) target = $region48
      $region47: #{tpu_custom_call.1} parent=5 // pred_region
        %s409 = ssub.s32 %s22, 2
        // Predicated region
        $region49: #{tpu_custom_call.1} parent=47 // pred_check
          %p410 = pneg %p121
        $region50: #{tpu_custom_call.1} parent=47 // pred_check_branch
          %412 = sbr.rel (%p410) target = $region52
        $region51: #{tpu_custom_call.1} parent=47 // pred_region
          %s413 = sand.u32 %s106, 1
          %s414 = scalar_lea.sflag [#allocation4], %s413
          %s415 = sand.u32 %s106, 1
          %s416 = smul.addr %s415, 8
          %s417 = scalar_lea.vmem [#allocation7], %s416
          %418 = dma.done %s414, 128
        $region52: #{tpu_custom_call.1} parent=47 // pred_fallthru
          _
        // Predicated region
        $region53: #{tpu_custom_call.1} parent=47 // pred_check
          %p419 = pneg %p149
        $region54: #{tpu_custom_call.1} parent=47 // pred_check_branch
          %421 = sbr.rel (%p419) target = $region56
        $region55: #{tpu_custom_call.1} parent=47 // pred_region
          %s422 = sand.u32 %s134, 1
          %s423 = scalar_lea.sflag [#allocation9], %s422
          %s424 = sand.u32 %s134, 1
          %s425 = smul.addr %s424, 8
          %s426 = scalar_lea.vmem [#allocation8], %s425
          %427 = dma.done %s423, 128
        $region56: #{tpu_custom_call.1} parent=47 // pred_fallthru
          _
      $region48: #{tpu_custom_call.1} parent=5 // pred_fallthru
        _
    $region6: #{tpu_custom_call.1} parent=1 // loop_footer
      %s26 = sadd.s32 1, %s22
    $region7: #{tpu_custom_call.1} parent=1 // loop_footer_branch
      %21 = sbr.rel target = $region3
    $region8: #{tpu_custom_call.1} parent=1 // loop_exit
      _
    %428 = vsyncpa [#allocation3], 1
    %s429 = scalar_lea.sflag [#allocation3], 1
    %430 = vsyncpa %s429, 1
    %431 = vsyncpa [#allocation6], 1
    %s432 = scalar_lea.sflag [#allocation6], 1
    %433 = vsyncpa %s432, 1
    %434 = vsyncpa [#allocation4], 1
    %s435 = scalar_lea.sflag [#allocation4], 1
    %436 = vsyncpa %s435, 1
    %437 = vsyncpa [#allocation9], 1
    %s438 = scalar_lea.sflag [#allocation9], 1
    %439 = vsyncpa %s438, 1

</llo_original>
